<compile_context>
chip_gen: v5e
topology: v5e:2x2
jax: 0.10.0
libtpu: 0.0.40
codegen_flags: <defaults>
</compile_context>

<pallas_src>
import functools

import jax
import jax.numpy as jnp
from jax.experimental import pallas as pl
from jax.experimental.pallas import tpu as pltpu


# ----------------------------------------------------------------------------
# Pallas kernel
# ----------------------------------------------------------------------------
def encoder_rnn_kernel(
    x_ref,        # (T*B, 2*Din) bf16, rows are [x(t) | x(T-1-t)] features
    wih_ref,      # (2*Din, 8H)  bf16, fused input weights, gate-major [i|f|o|g]
    bih_ref,      # (1, 8H)      f32, fused biases (b_ih + b_hh, both dirs)
    whh_ref,      # (2H, 8H)     bf16, block-diagonal recurrent weights
    whead_ref,    # (2H, 2*Dz)   bf16, [w_mu | w_sig]
    bhead_ref,    # (1, 2*Dz)    f32
    noise_ref,    # (B, Dz)      f32, standard-normal reparameterization noise
    out_ref,      # out (B, 3*Dz) f32 = [mu | sigma_hat | z]
    xp_ref,       # scratch VMEM (T*B, 8H) f32: precomputed input projections
    *, T, B, H, Dz,
):
    G = 2 * H  # width of one fused gate block ([fwd H | rev H])

    # ---- input projection hoisted out of the recurrence: one big bf16 matmul
    xp_ref[...] = (
        jnp.dot(x_ref[...], wih_ref[...], preferred_element_type=jnp.float32)
        + bih_ref[...]
    )

    # Loop-invariant recurrent weights, kept resident (bf16: 8 vregs at H=32).
    whh = whh_ref[...]

    h = jnp.zeros((B, G), jnp.float32)   # [h_fwd | h_rev]
    c = jnp.zeros((B, G), jnp.float32)   # [c_fwd | c_rev]

    # ---- fused fwd+rev recurrence, fully unrolled (T is static) ----
    for t in range(T):
        x_t = xp_ref[pl.ds(t * B, B), :]                       # (B, 8H) f32
        gates = (
            jnp.dot(h.astype(jnp.bfloat16), whh,
                    preferred_element_type=jnp.float32)
            + x_t
        )                                                      # (B, 8H) f32
        # Gate layout [i | f | o | g]: sigmoid over the first 3 blocks only,
        # tanh over the last block only (halves EUP work vs full-width both).
        sg = jax.nn.sigmoid(gates[:, 0:3 * G])
        i_g = sg[:, 0 * G:1 * G]
        f_g = sg[:, 1 * G:2 * G]
        o_g = sg[:, 2 * G:3 * G]
        g_g = jnp.tanh(gates[:, 3 * G:4 * G])
        c = f_g * c + i_g * g_g                                # f32 cell math
        h = o_g * jnp.tanh(c)

    # ---- fused mu / sigma heads (single bf16 matmul) ----
    head = (
        jnp.dot(h.astype(jnp.bfloat16), whead_ref[...],
                preferred_element_type=jnp.float32)
        + bhead_ref[...]
    )                                                          # (B, 2*Dz) f32
    mu = head[:, 0:Dz]
    sighat = head[:, Dz:2 * Dz]
    z = mu + jnp.exp(sighat * 0.5) * noise_ref[...]
    # Single fused output slab -> one output DMA.
    out_ref[...] = jnp.concatenate([head, z], axis=-1)


# ----------------------------------------------------------------------------
# Weight repacking (PyTorch-native layout -> fused gate-major kernel layout)
# ----------------------------------------------------------------------------
def pack_params(p):
    Din = p["w_ih_f"].shape[1]
    H = p["w_hh_f"].shape[1]
    # PyTorch gate row order is (i, f, g, o); kernel wants (i, f, o, g) so the
    # sigmoid gates are contiguous and tanh is last.
    perm = jnp.array([0, 1, 3, 2], dtype=jnp.int32)

    def fuse_gate_major(w_f, w_r, n_rows):
        # w_*: (4H, n_rows) PyTorch layout.
        # Output: (2*n_rows, 8H); columns = [i(2H) | f(2H) | o(2H) | g(2H)],
        # each 2H block = [fwd H | rev H]; rows 0:n_rows act on the fwd input,
        # rows n_rows:2*n_rows act on the rev input (block-diagonal).
        a = w_f.T.reshape(n_rows, 4, H)[:, perm, :]
        b = w_r.T.reshape(n_rows, 4, H)[:, perm, :]
        top = jnp.concatenate([a, jnp.zeros_like(a)], axis=-1)   # (n, 4, 2H)
        bot = jnp.concatenate([jnp.zeros_like(b), b], axis=-1)   # (n, 4, 2H)
        full = jnp.concatenate([top, bot], axis=0).reshape(2 * n_rows, 8 * H)
        return full.astype(jnp.bfloat16)

    w_ih = fuse_gate_major(p["w_ih_f"], p["w_ih_r"], Din)        # (2*Din, 8H)
    w_hh = fuse_gate_major(p["w_hh_f"], p["w_hh_r"], H)          # (2H, 8H)

    b_f = (p["b_ih_f"] + p["b_hh_f"]).reshape(4, H)[perm]
    b_r = (p["b_ih_r"] + p["b_hh_r"]).reshape(4, H)[perm]
    b_ih = jnp.concatenate([b_f, b_r], axis=-1).reshape(1, 8 * H)
    b_ih = b_ih.astype(jnp.float32)

    w_head = jnp.concatenate([p["w_mu"].T, p["w_sig"].T],
                             axis=1).astype(jnp.bfloat16)        # (2H, 2Dz)
    b_head = jnp.concatenate([p["b_mu"], p["b_sig"]]).reshape(1, -1)
    b_head = b_head.astype(jnp.float32)

    return {"w_ih": w_ih, "b_ih": b_ih, "w_hh": w_hh,
            "w_head": w_head, "b_head": b_head}


# ----------------------------------------------------------------------------
# Wrapper
# ----------------------------------------------------------------------------
@jax.jit
def encoder_rnn_forward(x, params, noise):
    """x: (T, B, 5). Returns (z, mu, sigma_hat), each (B, d_z)."""
    T, B, Din = x.shape
    H = params["w_hh_f"].shape[1]
    Dz = params["w_mu"].shape[0]
    Bp = ((B + 7) // 8) * 8          # pad batch to f32 sublane height

    packed = pack_params(params)

    x = x.astype(jnp.float32)
    x_pad = jnp.zeros((T, Bp, Din), jnp.float32).at[:, :B, :].set(x)
    # [x(t) | x(T-1-t)] features: bakes the reverse-direction time flip into
    # the (single) input-projection matmul.
    x_cat = jnp.concatenate([x_pad, jnp.flip(x_pad, axis=0)], axis=-1)
    x_flat = x_cat.reshape(T * Bp, 2 * Din).astype(jnp.bfloat16)
    noise_pad = jnp.zeros((Bp, Dz), jnp.float32).at[:B, :].set(
        noise.astype(jnp.float32))

    kernel = functools.partial(encoder_rnn_kernel, T=T, B=Bp, H=H, Dz=Dz)
    vmem = pl.BlockSpec(memory_space=pltpu.MemorySpace.VMEM)

    out = pl.pallas_call(
        kernel,
        out_shape=jax.ShapeDtypeStruct((Bp, 3 * Dz), jnp.float32),
        in_specs=[vmem] * 7,
        out_specs=vmem,
        scratch_shapes=[pltpu.VMEM((T * Bp, 8 * H), jnp.float32)],
    )(x_flat, packed["w_ih"], packed["b_ih"], packed["w_hh"],
      packed["w_head"], packed["b_head"], noise_pad)

    mu = out[:B, 0:Dz]
    sighat = out[:B, Dz:2 * Dz]
    z = out[:B, 2 * Dz:3 * Dz]
    return z, mu, sighat


# ----------------------------------------------------------------------------
# Reference (pure JAX, PyTorch semantics) and synthetic params
# ----------------------------------------------------------------------------
def encoder_rnn_reference(x, p, noise):
    T, B, _ = x.shape
    H = p["w_hh_f"].shape[1]
    x = x.astype(jnp.float32)

    def run(xs, w_ih, w_hh, b_ih, b_hh):
        h = jnp.zeros((B, H), jnp.float32)
        c = jnp.zeros((B, H), jnp.float32)
        for t in range(T):
            g = xs[t] @ w_ih.T + b_ih + h @ w_hh.T + b_hh
            i = jax.nn.sigmoid(g[:, 0:H])
            f = jax.nn.sigmoid(g[:, H:2 * H])
            gg = jnp.tanh(g[:, 2 * H:3 * H])
            o = jax.nn.sigmoid(g[:, 3 * H:4 * H])
            c = f * c + i * gg
            h = o * jnp.tanh(c)
        return h

    h_f = run(x, p["w_ih_f"], p["w_hh_f"], p["b_ih_f"], p["b_hh_f"])
    h_r = run(x[::-1], p["w_ih_r"], p["w_hh_r"], p["b_ih_r"], p["b_hh_r"])
    hidden = jnp.concatenate([h_f, h_r], axis=-1)
    mu = hidden @ p["w_mu"].T + p["b_mu"]
    sighat = hidden @ p["w_sig"].T + p["b_sig"]
    z = mu + jnp.exp(sighat / 2.0) * noise
    return z, mu, sighat


def init_params(key, d_in=5, enc_hidden_size=32, d_z=16):
    """Synthetic parameters in PyTorch-native shapes / init ranges."""
    H = enc_hidden_size
    ks = jax.random.split(key, 14)
    lstm_b = 1.0 / jnp.sqrt(H)
    lin_b = 1.0 / jnp.sqrt(2 * H)

    def u(k, shape, bound):
        return jax.random.uniform(k, shape, jnp.float32, -bound, bound)

    return {
        # gate row order: (i, f, g, o) — PyTorch nn.LSTM convention
        "w_ih_f": u(ks[0], (4 * H, d_in), lstm_b),
        "w_hh_f": u(ks[1], (4 * H, H), lstm_b),
        "b_ih_f": u(ks[2], (4 * H,), lstm_b),
        "b_hh_f": u(ks[3], (4 * H,), lstm_b),
        "w_ih_r": u(ks[4], (4 * H, d_in), lstm_b),
        "w_hh_r": u(ks[5], (4 * H, H), lstm_b),
        "b_ih_r": u(ks[6], (4 * H,), lstm_b),
        "b_hh_r": u(ks[7], (4 * H,), lstm_b),
        "w_mu": u(ks[8], (d_z, 2 * H), lin_b),
        "b_mu": u(ks[9], (d_z,), lin_b),
        "w_sig": u(ks[10], (d_z, 2 * H), lin_b),
        "b_sig": u(ks[11], (d_z,), lin_b),
    }


if __name__ == "__main__":
    T, B, D_IN, H, D_Z = 8, 2, 5, 32, 16

    root = jax.random.PRNGKey(0)
    k_params, k_x, k_noise = jax.random.split(root, 3)

    params = init_params(k_params, d_in=D_IN, enc_hidden_size=H, d_z=D_Z)
    x = jax.random.normal(k_x, (T, B, D_IN), dtype=jnp.float32)
    # torch.normal(zeros, ones) equivalent (reparameterization noise):
    noise = jax.random.normal(k_noise, (B, D_Z), dtype=jnp.float32)

    z, mu, sigma_hat = encoder_rnn_forward(x, params, noise)
    jax.block_until_ready((z, mu, sigma_hat))

    assert z.shape == (B, D_Z) and mu.shape == (B, D_Z) and sigma_hat.shape == (B, D_Z)

    # Verify the fused/repacked bf16-matmul kernel against a plain-JAX
    # PyTorch-semantics f32 reference.
    z_r, mu_r, sh_r = encoder_rnn_reference(x, params, noise)
    for name, a, b in (("z", z, z_r), ("mu", mu, mu_r), ("sigma_hat", sigma_hat, sh_r)):
        err = float(jnp.max(jnp.abs(a - b)))
        assert err < 5e-2, f"{name} mismatch: max abs err {err}"

    print("KERNEL_OK")
</pallas_src>

<mosaic_0001>
module attributes {stable_mosaic.version = 11 : i64} {
  func.func @encoder_rnn_kernel(%arg0: memref<64x10xbf16, #tpu.memory_space<vmem>>, %arg1: memref<10x256xbf16, #tpu.memory_space<vmem>>, %arg2: memref<1x256xf32, #tpu.memory_space<vmem>>, %arg3: memref<64x256xbf16, #tpu.memory_space<vmem>>, %arg4: memref<64x32xbf16, #tpu.memory_space<vmem>>, %arg5: memref<1x32xf32, #tpu.memory_space<vmem>>, %arg6: memref<8x16xf32, #tpu.memory_space<vmem>>, %arg7: memref<8x48xf32, #tpu.memory_space<vmem>>, %arg8: memref<64x256xf32, #tpu.memory_space<vmem>>) attributes {dimension_semantics = [], scalar_prefetch = 0 : i64, scratch_operands = 1 : i64, tpu.core_type = #tpu.core_type<tc>} {
    %c0 = arith.constant 0 : index
    %c0_0 = arith.constant 0 : index
    %0 = vector.load %arg0[%c0, %c0_0] : memref<64x10xbf16, #tpu.memory_space<vmem>>, vector<64x10xbf16>
    %c0_1 = arith.constant 0 : index
    %c0_2 = arith.constant 0 : index
    %1 = vector.load %arg1[%c0_1, %c0_2] : memref<10x256xbf16, #tpu.memory_space<vmem>>, vector<10x256xbf16>
    %cst = arith.constant dense<0.000000e+00> : vector<64x256xf32>
    %2 = tpu.matmul %0, %1, %cst {dimension_numbers = #tpu.dot_dimension_numbers<[1], [0], [0], [1], [0, 0, 1, 1], [], []>} : vector<64x10xbf16>, vector<10x256xbf16>, vector<64x256xf32> -> vector<64x256xf32>
    %c0_3 = arith.constant 0 : index
    %c0_4 = arith.constant 0 : index
    %3 = vector.load %arg2[%c0_3, %c0_4] : memref<1x256xf32, #tpu.memory_space<vmem>>, vector<1x256xf32>
    %4 = vector.broadcast %3 : vector<1x256xf32> to vector<64x256xf32>
    %5 = arith.addf %2, %4 : vector<64x256xf32>
    %c0_5 = arith.constant 0 : index
    %c0_6 = arith.constant 0 : index
    %6 = vector.load %arg8[%c0_5, %c0_6] : memref<64x256xf32, #tpu.memory_space<vmem>>, vector<64x256xf32>
    tpu.vector_store %arg8[%c0_5, %c0_6], %5 {strides = array<i32>} : memref<64x256xf32, #tpu.memory_space<vmem>>, vector<64x256xf32>,
    %c0_7 = arith.constant 0 : index
    %c0_8 = arith.constant 0 : index
    %7 = vector.load %arg3[%c0_7, %c0_8] : memref<64x256xbf16, #tpu.memory_space<vmem>>, vector<64x256xbf16>
    %cst_9 = arith.constant 0.000000e+00 : f32
    %8 = vector.broadcast %cst_9 : f32 to vector<8x64xf32>
    %cst_10 = arith.constant 0.000000e+00 : f32
    %9 = vector.broadcast %cst_10 : f32 to vector<8x64xf32>
    %c0_11 = arith.constant 0 : index
    %c0_12 = arith.constant 0 : index
    %10 = vector.load %arg8[%c0_11, %c0_12] : memref<64x256xf32, #tpu.memory_space<vmem>>, vector<8x256xf32>
    %11 = arith.truncf %8 : vector<8x64xf32> to vector<8x64xbf16>
    %cst_13 = arith.constant dense<0.000000e+00> : vector<8x256xf32>
    %12 = tpu.matmul %11, %7, %cst_13 {dimension_numbers = #tpu.dot_dimension_numbers<[1], [0], [0], [1], [0, 0, 1, 1], [], []>} : vector<8x64xbf16>, vector<64x256xbf16>, vector<8x256xf32> -> vector<8x256xf32>
    %13 = arith.addf %12, %10 : vector<8x256xf32>
    %14 = vector.extract_strided_slice %13 {offsets = [0, 0], sizes = [8, 192], strides = [1, 1]} : vector<8x256xf32> to vector<8x192xf32>
    %15 = arith.negf %14 : vector<8x192xf32>
    %16 = math.exp %15 : vector<8x192xf32>
    %cst_14 = arith.constant 1.000000e+00 : f32
    %17 = vector.broadcast %cst_14 : f32 to vector<8x192xf32>
    %18 = arith.addf %17, %16 : vector<8x192xf32>
    %19 = arith.divf %17, %18 : vector<8x192xf32>
    %20 = vector.extract_strided_slice %19 {offsets = [0, 0], sizes = [8, 64], strides = [1, 1]} : vector<8x192xf32> to vector<8x64xf32>
    %21 = vector.extract_strided_slice %19 {offsets = [0, 64], sizes = [8, 64], strides = [1, 1]} : vector<8x192xf32> to vector<8x64xf32>
    %22 = vector.extract_strided_slice %19 {offsets = [0, 128], sizes = [8, 64], strides = [1, 1]} : vector<8x192xf32> to vector<8x64xf32>
    %23 = vector.extract_strided_slice %13 {offsets = [0, 192], sizes = [8, 64], strides = [1, 1]} : vector<8x256xf32> to vector<8x64xf32>
    %24 = math.tanh %23 : vector<8x64xf32>
    %25 = arith.mulf %21, %9 : vector<8x64xf32>
    %26 = arith.mulf %20, %24 : vector<8x64xf32>
    %27 = arith.addf %25, %26 : vector<8x64xf32>
    %28 = math.tanh %27 : vector<8x64xf32>
    %29 = arith.mulf %22, %28 : vector<8x64xf32>
    %c8 = arith.constant 8 : index
    %c0_15 = arith.constant 0 : index
    %30 = vector.load %arg8[%c8, %c0_15] : memref<64x256xf32, #tpu.memory_space<vmem>>, vector<8x256xf32>
    %31 = arith.truncf %29 : vector<8x64xf32> to vector<8x64xbf16>
    %cst_16 = arith.constant dense<0.000000e+00> : vector<8x256xf32>
    %32 = tpu.matmul %31, %7, %cst_16 {dimension_numbers = #tpu.dot_dimension_numbers<[1], [0], [0], [1], [0, 0, 1, 1], [], []>} : vector<8x64xbf16>, vector<64x256xbf16>, vector<8x256xf32> -> vector<8x256xf32>
    %33 = arith.addf %32, %30 : vector<8x256xf32>
    %34 = vector.extract_strided_slice %33 {offsets = [0, 0], sizes = [8, 192], strides = [1, 1]} : vector<8x256xf32> to vector<8x192xf32>
    %35 = arith.negf %34 : vector<8x192xf32>
    %36 = math.exp %35 : vector<8x192xf32>
    %cst_17 = arith.constant 1.000000e+00 : f32
    %37 = vector.broadcast %cst_17 : f32 to vector<8x192xf32>
    %38 = arith.addf %37, %36 : vector<8x192xf32>
    %39 = arith.divf %37, %38 : vector<8x192xf32>
    %40 = vector.extract_strided_slice %39 {offsets = [0, 0], sizes = [8, 64], strides = [1, 1]} : vector<8x192xf32> to vector<8x64xf32>
    %41 = vector.extract_strided_slice %39 {offsets = [0, 64], sizes = [8, 64], strides = [1, 1]} : vector<8x192xf32> to vector<8x64xf32>
    %42 = vector.extract_strided_slice %39 {offsets = [0, 128], sizes = [8, 64], strides = [1, 1]} : vector<8x192xf32> to vector<8x64xf32>
    %43 = vector.extract_strided_slice %33 {offsets = [0, 192], sizes = [8, 64], strides = [1, 1]} : vector<8x256xf32> to vector<8x64xf32>
    %44 = math.tanh %43 : vector<8x64xf32>
    %45 = arith.mulf %41, %27 : vector<8x64xf32>
    %46 = arith.mulf %40, %44 : vector<8x64xf32>
    %47 = arith.addf %45, %46 : vector<8x64xf32>
    %48 = math.tanh %47 : vector<8x64xf32>
    %49 = arith.mulf %42, %48 : vector<8x64xf32>
    %c16 = arith.constant 16 : index
    %c0_18 = arith.constant 0 : index
    %50 = vector.load %arg8[%c16, %c0_18] : memref<64x256xf32, #tpu.memory_space<vmem>>, vector<8x256xf32>
    %51 = arith.truncf %49 : vector<8x64xf32> to vector<8x64xbf16>
    %cst_19 = arith.constant dense<0.000000e+00> : vector<8x256xf32>
    %52 = tpu.matmul %51, %7, %cst_19 {dimension_numbers = #tpu.dot_dimension_numbers<[1], [0], [0], [1], [0, 0, 1, 1], [], []>} : vector<8x64xbf16>, vector<64x256xbf16>, vector<8x256xf32> -> vector<8x256xf32>
    %53 = arith.addf %52, %50 : vector<8x256xf32>
    %54 = vector.extract_strided_slice %53 {offsets = [0, 0], sizes = [8, 192], strides = [1, 1]} : vector<8x256xf32> to vector<8x192xf32>
    %55 = arith.negf %54 : vector<8x192xf32>
    %56 = math.exp %55 : vector<8x192xf32>
    %cst_20 = arith.constant 1.000000e+00 : f32
    %57 = vector.broadcast %cst_20 : f32 to vector<8x192xf32>
    %58 = arith.addf %57, %56 : vector<8x192xf32>
    %59 = arith.divf %57, %58 : vector<8x192xf32>
    %60 = vector.extract_strided_slice %59 {offsets = [0, 0], sizes = [8, 64], strides = [1, 1]} : vector<8x192xf32> to vector<8x64xf32>
    %61 = vector.extract_strided_slice %59 {offsets = [0, 64], sizes = [8, 64], strides = [1, 1]} : vector<8x192xf32> to vector<8x64xf32>
    %62 = vector.extract_strided_slice %59 {offsets = [0, 128], sizes = [8, 64], strides = [1, 1]} : vector<8x192xf32> to vector<8x64xf32>
    %63 = vector.extract_strided_slice %53 {offsets = [0, 192], sizes = [8, 64], strides = [1, 1]} : vector<8x256xf32> to vector<8x64xf32>
    %64 = math.tanh %63 : vector<8x64xf32>
    %65 = arith.mulf %61, %47 : vector<8x64xf32>
    %66 = arith.mulf %60, %64 : vector<8x64xf32>
    %67 = arith.addf %65, %66 : vector<8x64xf32>
    %68 = math.tanh %67 : vector<8x64xf32>
    %69 = arith.mulf %62, %68 : vector<8x64xf32>
    %c24 = arith.constant 24 : index
    %c0_21 = arith.constant 0 : index
    %70 = vector.load %arg8[%c24, %c0_21] : memref<64x256xf32, #tpu.memory_space<vmem>>, vector<8x256xf32>
    %71 = arith.truncf %69 : vector<8x64xf32> to vector<8x64xbf16>
    %cst_22 = arith.constant dense<0.000000e+00> : vector<8x256xf32>
    %72 = tpu.matmul %71, %7, %cst_22 {dimension_numbers = #tpu.dot_dimension_numbers<[1], [0], [0], [1], [0, 0, 1, 1], [], []>} : vector<8x64xbf16>, vector<64x256xbf16>, vector<8x256xf32> -> vector<8x256xf32>
    %73 = arith.addf %72, %70 : vector<8x256xf32>
    %74 = vector.extract_strided_slice %73 {offsets = [0, 0], sizes = [8, 192], strides = [1, 1]} : vector<8x256xf32> to vector<8x192xf32>
    %75 = arith.negf %74 : vector<8x192xf32>
    %76 = math.exp %75 : vector<8x192xf32>
    %cst_23 = arith.constant 1.000000e+00 : f32
    %77 = vector.broadcast %cst_23 : f32 to vector<8x192xf32>
    %78 = arith.addf %77, %76 : vector<8x192xf32>
    %79 = arith.divf %77, %78 : vector<8x192xf32>
    %80 = vector.extract_strided_slice %79 {offsets = [0, 0], sizes = [8, 64], strides = [1, 1]} : vector<8x192xf32> to vector<8x64xf32>
    %81 = vector.extract_strided_slice %79 {offsets = [0, 64], sizes = [8, 64], strides = [1, 1]} : vector<8x192xf32> to vector<8x64xf32>
    %82 = vector.extract_strided_slice %79 {offsets = [0, 128], sizes = [8, 64], strides = [1, 1]} : vector<8x192xf32> to vector<8x64xf32>
    %83 = vector.extract_strided_slice %73 {offsets = [0, 192], sizes = [8, 64], strides = [1, 1]} : vector<8x256xf32> to vector<8x64xf32>
    %84 = math.tanh %83 : vector<8x64xf32>
    %85 = arith.mulf %81, %67 : vector<8x64xf32>
    %86 = arith.mulf %80, %84 : vector<8x64xf32>
    %87 = arith.addf %85, %86 : vector<8x64xf32>
    %88 = math.tanh %87 : vector<8x64xf32>
    %89 = arith.mulf %82, %88 : vector<8x64xf32>
    %c32 = arith.constant 32 : index
    %c0_24 = arith.constant 0 : index
    %90 = vector.load %arg8[%c32, %c0_24] : memref<64x256xf32, #tpu.memory_space<vmem>>, vector<8x256xf32>
    %91 = arith.truncf %89 : vector<8x64xf32> to vector<8x64xbf16>
    %cst_25 = arith.constant dense<0.000000e+00> : vector<8x256xf32>
    %92 = tpu.matmul %91, %7, %cst_25 {dimension_numbers = #tpu.dot_dimension_numbers<[1], [0], [0], [1], [0, 0, 1, 1], [], []>} : vector<8x64xbf16>, vector<64x256xbf16>, vector<8x256xf32> -> vector<8x256xf32>
    %93 = arith.addf %92, %90 : vector<8x256xf32>
    %94 = vector.extract_strided_slice %93 {offsets = [0, 0], sizes = [8, 192], strides = [1, 1]} : vector<8x256xf32> to vector<8x192xf32>
    %95 = arith.negf %94 : vector<8x192xf32>
    %96 = math.exp %95 : vector<8x192xf32>
    %cst_26 = arith.constant 1.000000e+00 : f32
    %97 = vector.broadcast %cst_26 : f32 to vector<8x192xf32>
    %98 = arith.addf %97, %96 : vector<8x192xf32>
    %99 = arith.divf %97, %98 : vector<8x192xf32>
    %100 = vector.extract_strided_slice %99 {offsets = [0, 0], sizes = [8, 64], strides = [1, 1]} : vector<8x192xf32> to vector<8x64xf32>
    %101 = vector.extract_strided_slice %99 {offsets = [0, 64], sizes = [8, 64], strides = [1, 1]} : vector<8x192xf32> to vector<8x64xf32>
    %102 = vector.extract_strided_slice %99 {offsets = [0, 128], sizes = [8, 64], strides = [1, 1]} : vector<8x192xf32> to vector<8x64xf32>
    %103 = vector.extract_strided_slice %93 {offsets = [0, 192], sizes = [8, 64], strides = [1, 1]} : vector<8x256xf32> to vector<8x64xf32>
    %104 = math.tanh %103 : vector<8x64xf32>
    %105 = arith.mulf %101, %87 : vector<8x64xf32>
    %106 = arith.mulf %100, %104 : vector<8x64xf32>
    %107 = arith.addf %105, %106 : vector<8x64xf32>
    %108 = math.tanh %107 : vector<8x64xf32>
    %109 = arith.mulf %102, %108 : vector<8x64xf32>
    %c40 = arith.constant 40 : index
    %c0_27 = arith.constant 0 : index
    %110 = vector.load %arg8[%c40, %c0_27] : memref<64x256xf32, #tpu.memory_space<vmem>>, vector<8x256xf32>
    %111 = arith.truncf %109 : vector<8x64xf32> to vector<8x64xbf16>
    %cst_28 = arith.constant dense<0.000000e+00> : vector<8x256xf32>
    %112 = tpu.matmul %111, %7, %cst_28 {dimension_numbers = #tpu.dot_dimension_numbers<[1], [0], [0], [1], [0, 0, 1, 1], [], []>} : vector<8x64xbf16>, vector<64x256xbf16>, vector<8x256xf32> -> vector<8x256xf32>
    %113 = arith.addf %112, %110 : vector<8x256xf32>
    %114 = vector.extract_strided_slice %113 {offsets = [0, 0], sizes = [8, 192], strides = [1, 1]} : vector<8x256xf32> to vector<8x192xf32>
    %115 = arith.negf %114 : vector<8x192xf32>
    %116 = math.exp %115 : vector<8x192xf32>
    %cst_29 = arith.constant 1.000000e+00 : f32
    %117 = vector.broadcast %cst_29 : f32 to vector<8x192xf32>
    %118 = arith.addf %117, %116 : vector<8x192xf32>
    %119 = arith.divf %117, %118 : vector<8x192xf32>
    %120 = vector.extract_strided_slice %119 {offsets = [0, 0], sizes = [8, 64], strides = [1, 1]} : vector<8x192xf32> to vector<8x64xf32>
    %121 = vector.extract_strided_slice %119 {offsets = [0, 64], sizes = [8, 64], strides = [1, 1]} : vector<8x192xf32> to vector<8x64xf32>
    %122 = vector.extract_strided_slice %119 {offsets = [0, 128], sizes = [8, 64], strides = [1, 1]} : vector<8x192xf32> to vector<8x64xf32>
    %123 = vector.extract_strided_slice %113 {offsets = [0, 192], sizes = [8, 64], strides = [1, 1]} : vector<8x256xf32> to vector<8x64xf32>
    %124 = math.tanh %123 : vector<8x64xf32>
    %125 = arith.mulf %121, %107 : vector<8x64xf32>
    %126 = arith.mulf %120, %124 : vector<8x64xf32>
    %127 = arith.addf %125, %126 : vector<8x64xf32>
    %128 = math.tanh %127 : vector<8x64xf32>
    %129 = arith.mulf %122, %128 : vector<8x64xf32>
    %c48 = arith.constant 48 : index
    %c0_30 = arith.constant 0 : index
    %130 = vector.load %arg8[%c48, %c0_30] : memref<64x256xf32, #tpu.memory_space<vmem>>, vector<8x256xf32>
    %131 = arith.truncf %129 : vector<8x64xf32> to vector<8x64xbf16>
    %cst_31 = arith.constant dense<0.000000e+00> : vector<8x256xf32>
    %132 = tpu.matmul %131, %7, %cst_31 {dimension_numbers = #tpu.dot_dimension_numbers<[1], [0], [0], [1], [0, 0, 1, 1], [], []>} : vector<8x64xbf16>, vector<64x256xbf16>, vector<8x256xf32> -> vector<8x256xf32>
    %133 = arith.addf %132, %130 : vector<8x256xf32>
    %134 = vector.extract_strided_slice %133 {offsets = [0, 0], sizes = [8, 192], strides = [1, 1]} : vector<8x256xf32> to vector<8x192xf32>
    %135 = arith.negf %134 : vector<8x192xf32>
    %136 = math.exp %135 : vector<8x192xf32>
    %cst_32 = arith.constant 1.000000e+00 : f32
    %137 = vector.broadcast %cst_32 : f32 to vector<8x192xf32>
    %138 = arith.addf %137, %136 : vector<8x192xf32>
    %139 = arith.divf %137, %138 : vector<8x192xf32>
    %140 = vector.extract_strided_slice %139 {offsets = [0, 0], sizes = [8, 64], strides = [1, 1]} : vector<8x192xf32> to vector<8x64xf32>
    %141 = vector.extract_strided_slice %139 {offsets = [0, 64], sizes = [8, 64], strides = [1, 1]} : vector<8x192xf32> to vector<8x64xf32>
    %142 = vector.extract_strided_slice %139 {offsets = [0, 128], sizes = [8, 64], strides = [1, 1]} : vector<8x192xf32> to vector<8x64xf32>
    %143 = vector.extract_strided_slice %133 {offsets = [0, 192], sizes = [8, 64], strides = [1, 1]} : vector<8x256xf32> to vector<8x64xf32>
    %144 = math.tanh %143 : vector<8x64xf32>
    %145 = arith.mulf %141, %127 : vector<8x64xf32>
    %146 = arith.mulf %140, %144 : vector<8x64xf32>
    %147 = arith.addf %145, %146 : vector<8x64xf32>
    %148 = math.tanh %147 : vector<8x64xf32>
    %149 = arith.mulf %142, %148 : vector<8x64xf32>
    %c56 = arith.constant 56 : index
    %c0_33 = arith.constant 0 : index
    %150 = vector.load %arg8[%c56, %c0_33] : memref<64x256xf32, #tpu.memory_space<vmem>>, vector<8x256xf32>
    %151 = arith.truncf %149 : vector<8x64xf32> to vector<8x64xbf16>
    %cst_34 = arith.constant dense<0.000000e+00> : vector<8x256xf32>
    %152 = tpu.matmul %151, %7, %cst_34 {dimension_numbers = #tpu.dot_dimension_numbers<[1], [0], [0], [1], [0, 0, 1, 1], [], []>} : vector<8x64xbf16>, vector<64x256xbf16>, vector<8x256xf32> -> vector<8x256xf32>
    %153 = arith.addf %152, %150 : vector<8x256xf32>
    %154 = vector.extract_strided_slice %153 {offsets = [0, 0], sizes = [8, 192], strides = [1, 1]} : vector<8x256xf32> to vector<8x192xf32>
    %155 = arith.negf %154 : vector<8x192xf32>
    %156 = math.exp %155 : vector<8x192xf32>
    %cst_35 = arith.constant 1.000000e+00 : f32
    %157 = vector.broadcast %cst_35 : f32 to vector<8x192xf32>
    %158 = arith.addf %157, %156 : vector<8x192xf32>
    %159 = arith.divf %157, %158 : vector<8x192xf32>
    %160 = vector.extract_strided_slice %159 {offsets = [0, 0], sizes = [8, 64], strides = [1, 1]} : vector<8x192xf32> to vector<8x64xf32>
    %161 = vector.extract_strided_slice %159 {offsets = [0, 64], sizes = [8, 64], strides = [1, 1]} : vector<8x192xf32> to vector<8x64xf32>
    %162 = vector.extract_strided_slice %159 {offsets = [0, 128], sizes = [8, 64], strides = [1, 1]} : vector<8x192xf32> to vector<8x64xf32>
    %163 = vector.extract_strided_slice %153 {offsets = [0, 192], sizes = [8, 64], strides = [1, 1]} : vector<8x256xf32> to vector<8x64xf32>
    %164 = math.tanh %163 : vector<8x64xf32>
    %165 = arith.mulf %161, %147 : vector<8x64xf32>
    %166 = arith.mulf %160, %164 : vector<8x64xf32>
    %167 = arith.addf %165, %166 : vector<8x64xf32>
    %168 = math.tanh %167 : vector<8x64xf32>
    %169 = arith.mulf %162, %168 : vector<8x64xf32>
    %170 = arith.truncf %169 : vector<8x64xf32> to vector<8x64xbf16>
    %c0_36 = arith.constant 0 : index
    %c0_37 = arith.constant 0 : index
    %171 = vector.load %arg4[%c0_36, %c0_37] : memref<64x32xbf16, #tpu.memory_space<vmem>>, vector<64x32xbf16>
    %cst_38 = arith.constant dense<0.000000e+00> : vector<8x32xf32>
    %172 = tpu.matmul %170, %171, %cst_38 {dimension_numbers = #tpu.dot_dimension_numbers<[1], [0], [0], [1], [0, 0, 1, 1], [], []>} : vector<8x64xbf16>, vector<64x32xbf16>, vector<8x32xf32> -> vector<8x32xf32>
    %c0_39 = arith.constant 0 : index
    %c0_40 = arith.constant 0 : index
    %173 = vector.load %arg5[%c0_39, %c0_40] : memref<1x32xf32, #tpu.memory_space<vmem>>, vector<1x32xf32>
    %174 = vector.broadcast %173 : vector<1x32xf32> to vector<8x32xf32>
    %175 = arith.addf %172, %174 : vector<8x32xf32>
    %176 = vector.extract_strided_slice %175 {offsets = [0, 0], sizes = [8, 16], strides = [1, 1]} : vector<8x32xf32> to vector<8x16xf32>
    %177 = vector.extract_strided_slice %175 {offsets = [0, 16], sizes = [8, 16], strides = [1, 1]} : vector<8x32xf32> to vector<8x16xf32>
    %cst_41 = arith.constant 5.000000e-01 : f32
    %178 = vector.broadcast %cst_41 : f32 to vector<8x16xf32>
    %179 = arith.mulf %177, %178 : vector<8x16xf32>
    %180 = math.exp %179 : vector<8x16xf32>
    %c0_42 = arith.constant 0 : index
    %c0_43 = arith.constant 0 : index
    %181 = vector.load %arg6[%c0_42, %c0_43] : memref<8x16xf32, #tpu.memory_space<vmem>>, vector<8x16xf32>
    %182 = arith.mulf %180, %181 : vector<8x16xf32>
    %183 = arith.addf %176, %182 : vector<8x16xf32>
    %184 = tpu.concatenate %175, %183 in 1 : vector<8x32xf32>, vector<8x16xf32> -> vector<8x48xf32>
    %c0_44 = arith.constant 0 : index
    %c0_45 = arith.constant 0 : index
    %185 = vector.load %arg7[%c0_44, %c0_45] : memref<8x48xf32, #tpu.memory_space<vmem>>, vector<8x48xf32>
    tpu.vector_store %arg7[%c0_44, %c0_45], %184 {strides = array<i32>} : memref<8x48xf32, #tpu.memory_space<vmem>>, vector<8x48xf32>,
    return
  }
}

</mosaic_0001>

<llo_original>
// kernel: encoder_rnn_forward.1
$region0: #{encoder_rnn_forward.1}
  #allocation0 [shape = 'u32[]', space=smem, size = 0x4, offset = 0x4, fixed_abs, tag = 'smem constant byte address 0x4 - core index']
  #allocation1 [shape = 'u32[72,128]{1,0:T(1,128)}', space=vmem, size = 0x9000, scoped, tag = 'internal scratch']
  #allocation2 [shape = 'f32[64,256]{1,0:T(8,128)}', space=vmem, size = 0x10000, scoped, tag = 'scratch operand']
  %s0 = inlined_call_operand.vmem [shape: bf16[64,10], index: 0, kind: input, shape index: {}]
  %s1 = inlined_call_operand.vmem [shape: bf16[10,256], index: 1, kind: input, shape index: {}]
  %s2 = inlined_call_operand.vmem [shape: f32[1,256], index: 2, kind: input, shape index: {}]
  %s3 = inlined_call_operand.vmem [shape: bf16[64,256], index: 3, kind: input, shape index: {}]
  %s4 = inlined_call_operand.vmem [shape: bf16[64,32], index: 4, kind: input, shape index: {}]
  %s5 = inlined_call_operand.vmem [shape: f32[1,32], index: 5, kind: input, shape index: {}]
  %s6 = inlined_call_operand.vmem [shape: f32[8,16], index: 6, kind: input, shape index: {}]
  %s7 = inlined_call_operand.vmem [shape: f32[8,48], index: 7, kind: output, shape index: {}]
  %s8 = sld [smem:[#allocation0]]
  $region38: #{encoder_rnn_forward.1} parent=0
    _
  %s10 = ssub.s32 1, %s8
  %s11 = scalar_select 0, %s10, %s8
  // Predicated region
  $region2: #{encoder_rnn_forward.1} parent=0 // pred_check
    _
  $region3: #{encoder_rnn_forward.1} parent=0 // pred_check_branch
    %13 = sbr.rel (0) target = $region5
  $region4: #{encoder_rnn_forward.1} parent=0 // pred_region
    _
  $region5: #{encoder_rnn_forward.1} parent=0 // pred_fallthru
    _
  // Predicated region
  $region6: #{encoder_rnn_forward.1} parent=0 // pred_check
    _
  $region7: #{encoder_rnn_forward.1} parent=0 // pred_check_branch
    %15 = sbr.rel (0) target = $region9
  $region8: #{encoder_rnn_forward.1} parent=0 // pred_region
    _
  $region9: #{encoder_rnn_forward.1} parent=0 // pred_fallthru
    _
  // Predicated region
  $region10: #{encoder_rnn_forward.1} parent=0 // pred_check
    _
  $region11: #{encoder_rnn_forward.1} parent=0 // pred_check_branch
    %17 = sbr.rel (0) target = $region13
  $region12: #{encoder_rnn_forward.1} parent=0 // pred_region
    _
  $region13: #{encoder_rnn_forward.1} parent=0 // pred_fallthru
    _
  // Predicated region
  $region14: #{encoder_rnn_forward.1} parent=0 // pred_check
    _
  $region15: #{encoder_rnn_forward.1} parent=0 // pred_check_branch
    %19 = sbr.rel (0) target = $region17
  $region16: #{encoder_rnn_forward.1} parent=0 // pred_region
    _
  $region17: #{encoder_rnn_forward.1} parent=0 // pred_fallthru
    _
  // Predicated region
  $region18: #{encoder_rnn_forward.1} parent=0 // pred_check
    _
  $region19: #{encoder_rnn_forward.1} parent=0 // pred_check_branch
    %21 = sbr.rel (0) target = $region21
  $region20: #{encoder_rnn_forward.1} parent=0 // pred_region
    _
  $region21: #{encoder_rnn_forward.1} parent=0 // pred_fallthru
    _
  // Predicated region
  $region22: #{encoder_rnn_forward.1} parent=0 // pred_check
    _
  $region23: #{encoder_rnn_forward.1} parent=0 // pred_check_branch
    %23 = sbr.rel (0) target = $region25
  $region24: #{encoder_rnn_forward.1} parent=0 // pred_region
    _
  $region25: #{encoder_rnn_forward.1} parent=0 // pred_fallthru
    _
  // Predicated region
  $region26: #{encoder_rnn_forward.1} parent=0 // pred_check
    _
  $region27: #{encoder_rnn_forward.1} parent=0 // pred_check_branch
    %25 = sbr.rel (0) target = $region29
  $region28: #{encoder_rnn_forward.1} parent=0 // pred_region
    _
  $region29: #{encoder_rnn_forward.1} parent=0 // pred_fallthru
    _
  %v27 = vld [vmem:[%s0] sm:$0xf]
  %v28 = vld [vmem:[%s0 + $0x4] sm:$0xf]
  %v29 = vld [vmem:[%s0 + $0x8] sm:$0xf]
  %v30 = vld [vmem:[%s0 + $0xc] sm:$0xf]
  %v31 = vld [vmem:[%s0 + $0x10] sm:$0xf]
  %v32 = vld [vmem:[%s0 + $0x14] sm:$0xf]
  %v33 = vld [vmem:[%s0 + $0x18] sm:$0xf]
  %v34 = vld [vmem:[%s0 + $0x1c] sm:$0xf]
  %v35 = vld [vmem:[%s1] sm:$0xff]
  %v36 = vld [vmem:[%s1 + $0x8] sm:$0x11]
  %v37 = vld [vmem:[%s2] sm:$0x3]
  %v39 = vperm.slane %v37, 0
  %v40 = vperm.slane %v37, 1
  %v51 = vunpack.c.l.b16 %v27
  %v52 = vunpack.c.l.b16 %v28
  %v53 = vunpack.c.l.b16 %v29
  %v54 = vunpack.c.l.b16 %v30
  %v55 = vunpack.c.l.b16 %v31
  %v56 = vunpack.c.l.b16 %v32
  %v57 = vunpack.c.l.b16 %v33
  %v58 = vunpack.c.l.b16 %v34
  %v59 = vpack.c.b16 %v52, %v51
  %v60 = vpack.c.b16 %v54, %v53
  %v61 = vpack.c.b16 %v56, %v55
  %v62 = vpack.c.b16 %v58, %v57
  %v65 = vunpack.c.l.b16 %v35
  %v66 = vunpack.c.h.b16 %v35
  %v67 = vunpack.c.l.b16 %v36
  %v68 = vunpack.c.h.b16 %v36
  %v69 = vpack.c.b16 %v67, %v65
  %v70 = vpack.c.b16 %v68, %v66
  %vm71 = vcmask 80896
  %v73 = vsel %vm71, %v59, 0
  %v76 = vsel %vm71, %v60, 0
  %v79 = vsel %vm71, %v61, 0
  %v82 = vsel %vm71, %v62, 0
  %vm84 = vcmask 1044480
  %v86 = vsel %vm84, %v69, 0
  %v89 = vsel %vm84, %v70, 0
  %91 = vmatpush.bf16.msra.mxu0 0
  %92 = vmatpush.bf16.msra.mxu0 0
  %93 = vmatpush.bf16.msra.mxu0 0
  %94 = vmatpush.bf16.msra.mxu0 0
  %95 = vmatpush.bf16.msra.mxu0 0
  %96 = vmatpush.bf16.msra.mxu0 0
  %97 = vmatpush.bf16.msra.mxu0 0
  %98 = vmatpush.bf16.msra.mxu0 %v86
  %99 = vmatmul.bf16.gmra.mxu0 %v73
  %v100 = vpop.f32.mrf.mxu0
  %v101 = vadd.f32 %v39, %v100
  %v102 = vpop.f32.mrf.mxu0
  %v103 = vadd.f32 %v39, %v102
  %104 = vmatmul.bf16.gmra.mxu0 %v76
  %v105 = vpop.f32.mrf.mxu0
  %v106 = vadd.f32 %v39, %v105
  %v107 = vpop.f32.mrf.mxu0
  %v108 = vadd.f32 %v39, %v107
  %109 = vmatmul.bf16.gmra.mxu0 %v79
  %v110 = vpop.f32.mrf.mxu0
  %v111 = vadd.f32 %v39, %v110
  %v112 = vpop.f32.mrf.mxu0
  %v113 = vadd.f32 %v39, %v112
  %114 = vmatmul.bf16.gmra.mxu0 %v82
  %v115 = vpop.f32.mrf.mxu0
  %v116 = vadd.f32 %v39, %v115
  %v117 = vpop.f32.mrf.mxu0
  %v118 = vadd.f32 %v39, %v117
  %119 = vdwg.mxu0
  %120 = vmatpush.bf16.msra.mxu0 0
  %121 = vmatpush.bf16.msra.mxu0 0
  %122 = vmatpush.bf16.msra.mxu0 0
  %123 = vmatpush.bf16.msra.mxu0 0
  %124 = vmatpush.bf16.msra.mxu0 0
  %125 = vmatpush.bf16.msra.mxu0 0
  %126 = vmatpush.bf16.msra.mxu0 0
  %127 = vmatpush.bf16.msra.mxu0 %v89
  %128 = vmatmul.bf16.gmra.mxu0 %v73
  %v129 = vpop.f32.mrf.mxu0
  %v130 = vadd.f32 %v40, %v129
  %v131 = vpop.f32.mrf.mxu0
  %v132 = vadd.f32 %v40, %v131
  %133 = vmatmul.bf16.gmra.mxu0 %v76
  %v134 = vpop.f32.mrf.mxu0
  %v135 = vadd.f32 %v40, %v134
  %v136 = vpop.f32.mrf.mxu0
  %v137 = vadd.f32 %v40, %v136
  %138 = vmatmul.bf16.gmra.mxu0 %v79
  %v139 = vpop.f32.mrf.mxu0
  %v140 = vadd.f32 %v40, %v139
  %v141 = vpop.f32.mrf.mxu0
  %v142 = vadd.f32 %v40, %v141
  %143 = vmatmul.bf16.gmra.mxu0 %v82
  %v144 = vpop.f32.mrf.mxu0
  %v145 = vadd.f32 %v40, %v144
  %v146 = vpop.f32.mrf.mxu0
  %v147 = vadd.f32 %v40, %v146
  %148 = vdwg.mxu0
  %149 = vst [vmem:[#allocation2] sm:$0xff] %v101
  %150 = vst [vmem:[#allocation2 + $0x8] sm:$0xff] %v130
  %151 = vst [vmem:[#allocation2 + $0x10] sm:$0xff] %v103
  %152 = vst [vmem:[#allocation2 + $0x18] sm:$0xff] %v132
  %153 = vst [vmem:[#allocation2 + $0x20] sm:$0xff] %v106
  %154 = vst [vmem:[#allocation2 + $0x28] sm:$0xff] %v135
  %155 = vst [vmem:[#allocation2 + $0x30] sm:$0xff] %v108
  %156 = vst [vmem:[#allocation2 + $0x38] sm:$0xff] %v137
  %157 = vst [vmem:[#allocation2 + $0x40] sm:$0xff] %v111
  %158 = vst [vmem:[#allocation2 + $0x48] sm:$0xff] %v140
  %159 = vst [vmem:[#allocation2 + $0x50] sm:$0xff] %v113
  %160 = vst [vmem:[#allocation2 + $0x58] sm:$0xff] %v142
  %161 = vst [vmem:[#allocation2 + $0x60] sm:$0xff] %v116
  %162 = vst [vmem:[#allocation2 + $0x68] sm:$0xff] %v145
  %163 = vst [vmem:[#allocation2 + $0x70] sm:$0xff] %v118
  %164 = vst [vmem:[#allocation2 + $0x78] sm:$0xff] %v147
  %v165 = vld [vmem:[%s3] sm:$0xff]
  %v166 = vld [vmem:[%s3 + $0x8] sm:$0xff]
  %v167 = vld [vmem:[%s3 + $0x10] sm:$0xff]
  %v168 = vld [vmem:[%s3 + $0x18] sm:$0xff]
  %v169 = vld [vmem:[%s3 + $0x20] sm:$0xff]
  %v170 = vld [vmem:[%s3 + $0x28] sm:$0xff]
  %v171 = vld [vmem:[%s3 + $0x30] sm:$0xff]
  %v172 = vld [vmem:[%s3 + $0x38] sm:$0xff]
  %v173 = vld [vmem:[#allocation2] sm:$0xff]
  %v174 = vld [vmem:[#allocation2 + $0x8] sm:$0xff]
  %v183 = vunpack.c.l.b16 %v165
  %v184 = vunpack.c.h.b16 %v165
  %v185 = vunpack.c.l.b16 %v166
  %v186 = vunpack.c.h.b16 %v166
  %v187 = vunpack.c.l.b16 %v167
  %v188 = vunpack.c.h.b16 %v167
  %v189 = vunpack.c.l.b16 %v168
  %v190 = vunpack.c.h.b16 %v168
  %v191 = vunpack.c.l.b16 %v169
  %v192 = vunpack.c.h.b16 %v169
  %v193 = vunpack.c.l.b16 %v170
  %v194 = vunpack.c.h.b16 %v170
  %v195 = vunpack.c.l.b16 %v171
  %v196 = vunpack.c.h.b16 %v171
  %v197 = vunpack.c.l.b16 %v172
  %v198 = vunpack.c.h.b16 %v172
  %v199 = vpack.c.b16 %v185, %v183
  %v200 = vpack.c.b16 %v186, %v184
  %v201 = vpack.c.b16 %v189, %v187
  %v202 = vpack.c.b16 %v190, %v188
  %v203 = vpack.c.b16 %v193, %v191
  %v204 = vpack.c.b16 %v194, %v192
  %v205 = vpack.c.b16 %v197, %v195
  %v206 = vpack.c.b16 %v198, %v196
  %vm215 = vcmask 523264
  %v217 = vsel %vm215, 0, 0
  %219 = vmatpush.bf16.msra.mxu0 0
  %220 = vmatpush.bf16.msra.mxu0 0
  %221 = vmatpush.bf16.msra.mxu0 0
  %222 = vmatpush.bf16.msra.mxu0 0
  %223 = vmatpush.bf16.msra.mxu0 %v205
  %224 = vmatpush.bf16.msra.mxu0 %v203
  %225 = vmatpush.bf16.msra.mxu0 %v201
  %226 = vmatpush.bf16.msra.mxu0 %v199
  %227 = vmatmul.bf16.gmra.mxu0 %v217
  %v228 = vpop.f32.mrf.mxu0
  %v229 = vadd.f32 %v173, %v228
  %v230 = vpop.f32.mrf.mxu0
  %231 = vdwg.mxu0
  %232 = vmatpush.bf16.msra.mxu0 0
  %233 = vmatpush.bf16.msra.mxu0 0
  %234 = vmatpush.bf16.msra.mxu0 0
  %235 = vmatpush.bf16.msra.mxu0 0
  %236 = vmatpush.bf16.msra.mxu0 %v206
  %237 = vmatpush.bf16.msra.mxu0 %v204
  %238 = vmatpush.bf16.msra.mxu0 %v202
  %239 = vmatpush.bf16.msra.mxu0 %v200
  %240 = vmatmul.bf16.gmra.mxu0 %v217
  %v241 = vpop.f32.mrf.mxu0
  %v242 = vadd.f32 %v174, %v241
  %v243 = vpop.f32.mrf.mxu0
  %244 = vdwg.mxu0
  %v245 = vxor.u32 %v229, 2147483648
  %v246 = vxor.u32 %v242, 2147483648
  %v247 = vmul.f32 %v245, 1.442695
  %v248 = vpow.pop %v247
  %v249 = vmul.f32 %v246, 1.442695
  %v250 = vpow.pop %v249
  %v251 = vadd.f32 %v248, 1.0
  %v252 = vadd.f32 %v250, 1.0
  %v253 = vrcp.pop %v251
  %v254 = vmul.f32 %v251, %v253
  %v255 = vsub.f32 1.0, %v254
  %v256 = vmul.f32 %v253, %v255
  %v257 = vadd.f32 %v253, %v256
  %vm258 = vweird.f32 %v251
  %vm259 = vweird.f32 %v253
  %vm260 = vmor %vm258, %vm259
  %v261 = vsel %vm260, %v253, %v257
  %v262 = vand.u32 2147483647, %v251
  %vm263 = vcmp.eq.f32.partialorder %v262, 8.507059e+37
  %v264 = vand.u32 %v251, 2147483648
  %v265 = vor.u32 1.1754944e-38, %v264
  %v266 = vsel %vm263, %v265, %v261
  %v267 = vmul.f32 1.0, %v266
  %v268 = vrcp.pop %v252
  %v269 = vmul.f32 %v252, %v268
  %v270 = vsub.f32 1.0, %v269
  %v271 = vmul.f32 %v268, %v270
  %v272 = vadd.f32 %v268, %v271
  %vm273 = vweird.f32 %v252
  %vm274 = vweird.f32 %v268
  %vm275 = vmor %vm273, %vm274
  %v276 = vsel %vm275, %v268, %v272
  %v277 = vand.u32 2147483647, %v252
  %vm278 = vcmp.eq.f32.partialorder %v277, 8.507059e+37
  %v279 = vand.u32 %v252, 2147483648
  %v280 = vor.u32 1.1754944e-38, %v279
  %v281 = vsel %vm278, %v280, %v276
  %v282 = vmul.f32 1.0, %v281
  %v283 = vtanh.pop %v242
  %v284 = vmul.f32 %v267, 0.0
  %286 = vrot.lane.b32.xlu0 %v283, 64
  %v287 = vpop.permute.xlu0 %286
  %v289 = vmul.f32 %v267, %v287
  %291 = vrot.lane.b32.xlu0 %v289, 64
  %v292 = vpop.permute.xlu0 %291
  %v294 = vadd.f32 %v284, %v292
  %v295 = vtanh.pop %v294
  %297 = vrot.lane.b32.xlu0 %v295, 64
  %v298 = vpop.permute.xlu0 %297
  %v300 = vmul.f32 %v282, %v298
  %v301 = vld [vmem:[#allocation2 + $0x10] sm:$0xff]
  %v302 = vld [vmem:[#allocation2 + $0x18] sm:$0xff]
  %v303 = vpack.c.bf16 %v300, %v300
  %v305 = vsel %vm215, %v303, 0
  %307 = vmatpush.bf16.msra.mxu0 0
  %308 = vmatpush.bf16.msra.mxu0 0
  %309 = vmatpush.bf16.msra.mxu0 0
  %310 = vmatpush.bf16.msra.mxu0 0
  %311 = vmatpush.bf16.msra.mxu0 %v205
  %312 = vmatpush.bf16.msra.mxu0 %v203
  %313 = vmatpush.bf16.msra.mxu0 %v201
  %314 = vmatpush.bf16.msra.mxu0 %v199
  %315 = vmatmul.bf16.gmra.mxu0 %v305
  %v316 = vpop.f32.mrf.mxu0
  %v317 = vadd.f32 %v301, %v316
  %v318 = vpop.f32.mrf.mxu0
  %319 = vdwg.mxu0
  %320 = vmatpush.bf16.msra.mxu0 0
  %321 = vmatpush.bf16.msra.mxu0 0
  %322 = vmatpush.bf16.msra.mxu0 0
  %323 = vmatpush.bf16.msra.mxu0 0
  %324 = vmatpush.bf16.msra.mxu0 %v206
  %325 = vmatpush.bf16.msra.mxu0 %v204
  %326 = vmatpush.bf16.msra.mxu0 %v202
  %327 = vmatpush.bf16.msra.mxu0 %v200
  %328 = vmatmul.bf16.gmra.mxu0 %v305
  %v329 = vpop.f32.mrf.mxu0
  %v330 = vadd.f32 %v302, %v329
  %v331 = vpop.f32.mrf.mxu0
  %332 = vdwg.mxu0
  %v333 = vxor.u32 %v317, 2147483648
  %v334 = vxor.u32 %v330, 2147483648
  %v335 = vmul.f32 %v333, 1.442695
  %v336 = vpow.pop %v335
  %v337 = vmul.f32 %v334, 1.442695
  %v338 = vpow.pop %v337
  %v339 = vadd.f32 %v336, 1.0
  %v340 = vadd.f32 %v338, 1.0
  %v341 = vrcp.pop %v339
  %v342 = vmul.f32 %v339, %v341
  %v343 = vsub.f32 1.0, %v342
  %v344 = vmul.f32 %v341, %v343
  %v345 = vadd.f32 %v341, %v344
  %vm346 = vweird.f32 %v339
  %vm347 = vweird.f32 %v341
  %vm348 = vmor %vm346, %vm347
  %v349 = vsel %vm348, %v341, %v345
  %v350 = vand.u32 2147483647, %v339
  %vm351 = vcmp.eq.f32.partialorder %v350, 8.507059e+37
  %v352 = vand.u32 %v339, 2147483648
  %v353 = vor.u32 1.1754944e-38, %v352
  %v354 = vsel %vm351, %v353, %v349
  %v355 = vmul.f32 1.0, %v354
  %v356 = vrcp.pop %v340
  %v357 = vmul.f32 %v340, %v356
  %v358 = vsub.f32 1.0, %v357
  %v359 = vmul.f32 %v356, %v358
  %v360 = vadd.f32 %v356, %v359
  %vm361 = vweird.f32 %v340
  %vm362 = vweird.f32 %v356
  %vm363 = vmor %vm361, %vm362
  %v364 = vsel %vm363, %v356, %v360
  %v365 = vand.u32 2147483647, %v340
  %vm366 = vcmp.eq.f32.partialorder %v365, 8.507059e+37
  %v367 = vand.u32 %v340, 2147483648
  %v368 = vor.u32 1.1754944e-38, %v367
  %v369 = vsel %vm366, %v368, %v364
  %v370 = vmul.f32 1.0, %v369
  %v371 = vtanh.pop %v330
  %v372 = vmul.f32 %v355, %v294
  %374 = vrot.lane.b32.xlu0 %v371, 64
  %v375 = vpop.permute.xlu0 %374
  %v377 = vmul.f32 %v355, %v375
  %379 = vrot.lane.b32.xlu0 %v377, 64
  %v380 = vpop.permute.xlu0 %379
  %v382 = vadd.f32 %v372, %v380
  %v383 = vtanh.pop %v382
  %385 = vrot.lane.b32.xlu0 %v383, 64
  %v386 = vpop.permute.xlu0 %385
  %v388 = vmul.f32 %v370, %v386
  %v389 = vld [vmem:[#allocation2 + $0x20] sm:$0xff]
  %v390 = vld [vmem:[#allocation2 + $0x28] sm:$0xff]
  %v391 = vpack.c.bf16 %v388, %v388
  %v393 = vsel %vm215, %v391, 0
  %395 = vmatpush.bf16.msra.mxu0 0
  %396 = vmatpush.bf16.msra.mxu0 0
  %397 = vmatpush.bf16.msra.mxu0 0
  %398 = vmatpush.bf16.msra.mxu0 0
  %399 = vmatpush.bf16.msra.mxu0 %v205
  %400 = vmatpush.bf16.msra.mxu0 %v203
  %401 = vmatpush.bf16.msra.mxu0 %v201
  %402 = vmatpush.bf16.msra.mxu0 %v199
  %403 = vmatmul.bf16.gmra.mxu0 %v393
  %v404 = vpop.f32.mrf.mxu0
  %v405 = vadd.f32 %v389, %v404
  %v406 = vpop.f32.mrf.mxu0
  %407 = vdwg.mxu0
  %408 = vmatpush.bf16.msra.mxu0 0
  %409 = vmatpush.bf16.msra.mxu0 0
  %410 = vmatpush.bf16.msra.mxu0 0
  %411 = vmatpush.bf16.msra.mxu0 0
  %412 = vmatpush.bf16.msra.mxu0 %v206
  %413 = vmatpush.bf16.msra.mxu0 %v204
  %414 = vmatpush.bf16.msra.mxu0 %v202
  %415 = vmatpush.bf16.msra.mxu0 %v200
  %416 = vmatmul.bf16.gmra.mxu0 %v393
  %v417 = vpop.f32.mrf.mxu0
  %v418 = vadd.f32 %v390, %v417
  %v419 = vpop.f32.mrf.mxu0
  %420 = vdwg.mxu0
  %v421 = vxor.u32 %v405, 2147483648
  %v422 = vxor.u32 %v418, 2147483648
  %v423 = vmul.f32 %v421, 1.442695
  %v424 = vpow.pop %v423
  %v425 = vmul.f32 %v422, 1.442695
  %v426 = vpow.pop %v425
  %v427 = vadd.f32 %v424, 1.0
  %v428 = vadd.f32 %v426, 1.0
  %v429 = vrcp.pop %v427
  %v430 = vmul.f32 %v427, %v429
  %v431 = vsub.f32 1.0, %v430
  %v432 = vmul.f32 %v429, %v431
  %v433 = vadd.f32 %v429, %v432
  %vm434 = vweird.f32 %v427
  %vm435 = vweird.f32 %v429
  %vm436 = vmor %vm434, %vm435
  %v437 = vsel %vm436, %v429, %v433
  %v438 = vand.u32 2147483647, %v427
  %vm439 = vcmp.eq.f32.partialorder %v438, 8.507059e+37
  %v440 = vand.u32 %v427, 2147483648
  %v441 = vor.u32 1.1754944e-38, %v440
  %v442 = vsel %vm439, %v441, %v437
  %v443 = vmul.f32 1.0, %v442
  %v444 = vrcp.pop %v428
  %v445 = vmul.f32 %v428, %v444
  %v446 = vsub.f32 1.0, %v445
  %v447 = vmul.f32 %v444, %v446
  %v448 = vadd.f32 %v444, %v447
  %vm449 = vweird.f32 %v428
  %vm450 = vweird.f32 %v444
  %vm451 = vmor %vm449, %vm450
  %v452 = vsel %vm451, %v444, %v448
  %v453 = vand.u32 2147483647, %v428
  %vm454 = vcmp.eq.f32.partialorder %v453, 8.507059e+37
  %v455 = vand.u32 %v428, 2147483648
  %v456 = vor.u32 1.1754944e-38, %v455
  %v457 = vsel %vm454, %v456, %v452
  %v458 = vmul.f32 1.0, %v457
  %v459 = vtanh.pop %v418
  %v460 = vmul.f32 %v443, %v382
  %462 = vrot.lane.b32.xlu0 %v459, 64
  %v463 = vpop.permute.xlu0 %462
  %v465 = vmul.f32 %v443, %v463
  %467 = vrot.lane.b32.xlu0 %v465, 64
  %v468 = vpop.permute.xlu0 %467
  %v470 = vadd.f32 %v460, %v468
  %v471 = vtanh.pop %v470
  %473 = vrot.lane.b32.xlu0 %v471, 64
  %v474 = vpop.permute.xlu0 %473
  %v476 = vmul.f32 %v458, %v474
  %v477 = vld [vmem:[#allocation2 + $0x30] sm:$0xff]
  %v478 = vld [vmem:[#allocation2 + $0x38] sm:$0xff]
  %v479 = vpack.c.bf16 %v476, %v476
  %v481 = vsel %vm215, %v479, 0
  %483 = vmatpush.bf16.msra.mxu0 0
  %484 = vmatpush.bf16.msra.mxu0 0
  %485 = vmatpush.bf16.msra.mxu0 0
  %486 = vmatpush.bf16.msra.mxu0 0
  %487 = vmatpush.bf16.msra.mxu0 %v205
  %488 = vmatpush.bf16.msra.mxu0 %v203
  %489 = vmatpush.bf16.msra.mxu0 %v201
  %490 = vmatpush.bf16.msra.mxu0 %v199
  %491 = vmatmul.bf16.gmra.mxu0 %v481
  %v492 = vpop.f32.mrf.mxu0
  %v493 = vadd.f32 %v477, %v492
  %v494 = vpop.f32.mrf.mxu0
  %495 = vdwg.mxu0
  %496 = vmatpush.bf16.msra.mxu0 0
  %497 = vmatpush.bf16.msra.mxu0 0
  %498 = vmatpush.bf16.msra.mxu0 0
  %499 = vmatpush.bf16.msra.mxu0 0
  %500 = vmatpush.bf16.msra.mxu0 %v206
  %501 = vmatpush.bf16.msra.mxu0 %v204
  %502 = vmatpush.bf16.msra.mxu0 %v202
  %503 = vmatpush.bf16.msra.mxu0 %v200
  %504 = vmatmul.bf16.gmra.mxu0 %v481
  %v505 = vpop.f32.mrf.mxu0
  %v506 = vadd.f32 %v478, %v505
  %v507 = vpop.f32.mrf.mxu0
  %508 = vdwg.mxu0
  %v509 = vxor.u32 %v493, 2147483648
  %v510 = vxor.u32 %v506, 2147483648
  %v511 = vmul.f32 %v509, 1.442695
  %v512 = vpow.pop %v511
  %v513 = vmul.f32 %v510, 1.442695
  %v514 = vpow.pop %v513
  %v515 = vadd.f32 %v512, 1.0
  %v516 = vadd.f32 %v514, 1.0
  %v517 = vrcp.pop %v515
  %v518 = vmul.f32 %v515, %v517
  %v519 = vsub.f32 1.0, %v518
  %v520 = vmul.f32 %v517, %v519
  %v521 = vadd.f32 %v517, %v520
  %vm522 = vweird.f32 %v515
  %vm523 = vweird.f32 %v517
  %vm524 = vmor %vm522, %vm523
  %v525 = vsel %vm524, %v517, %v521
  %v526 = vand.u32 2147483647, %v515
  %vm527 = vcmp.eq.f32.partialorder %v526, 8.507059e+37
  %v528 = vand.u32 %v515, 2147483648
  %v529 = vor.u32 1.1754944e-38, %v528
  %v530 = vsel %vm527, %v529, %v525
  %v531 = vmul.f32 1.0, %v530
  %v532 = vrcp.pop %v516
  %v533 = vmul.f32 %v516, %v532
  %v534 = vsub.f32 1.0, %v533
  %v535 = vmul.f32 %v532, %v534
  %v536 = vadd.f32 %v532, %v535
  %vm537 = vweird.f32 %v516
  %vm538 = vweird.f32 %v532
  %vm539 = vmor %vm537, %vm538
  %v540 = vsel %vm539, %v532, %v536
  %v541 = vand.u32 2147483647, %v516
  %vm542 = vcmp.eq.f32.partialorder %v541, 8.507059e+37
  %v543 = vand.u32 %v516, 2147483648
  %v544 = vor.u32 1.1754944e-38, %v543
  %v545 = vsel %vm542, %v544, %v540
  %v546 = vmul.f32 1.0, %v545
  %v547 = vtanh.pop %v506
  %v548 = vmul.f32 %v531, %v470
  %550 = vrot.lane.b32.xlu0 %v547, 64
  %v551 = vpop.permute.xlu0 %550
  %v553 = vmul.f32 %v531, %v551
  %555 = vrot.lane.b32.xlu0 %v553, 64
  %v556 = vpop.permute.xlu0 %555
  %v558 = vadd.f32 %v548, %v556
  %v559 = vtanh.pop %v558
  %561 = vrot.lane.b32.xlu0 %v559, 64
  %v562 = vpop.permute.xlu0 %561
  %v564 = vmul.f32 %v546, %v562
  %v565 = vld [vmem:[#allocation2 + $0x40] sm:$0xff]
  %v566 = vld [vmem:[#allocation2 + $0x48] sm:$0xff]
  %v567 = vpack.c.bf16 %v564, %v564
  %v569 = vsel %vm215, %v567, 0
  %571 = vmatpush.bf16.msra.mxu0 0
  %572 = vmatpush.bf16.msra.mxu0 0
  %573 = vmatpush.bf16.msra.mxu0 0
  %574 = vmatpush.bf16.msra.mxu0 0
  %575 = vmatpush.bf16.msra.mxu0 %v205
  %576 = vmatpush.bf16.msra.mxu0 %v203
  %577 = vmatpush.bf16.msra.mxu0 %v201
  %578 = vmatpush.bf16.msra.mxu0 %v199
  %579 = vmatmul.bf16.gmra.mxu0 %v569
  %v580 = vpop.f32.mrf.mxu0
  %v581 = vadd.f32 %v565, %v580
  %v582 = vpop.f32.mrf.mxu0
  %583 = vdwg.mxu0
  %584 = vmatpush.bf16.msra.mxu0 0
  %585 = vmatpush.bf16.msra.mxu0 0
  %586 = vmatpush.bf16.msra.mxu0 0
  %587 = vmatpush.bf16.msra.mxu0 0
  %588 = vmatpush.bf16.msra.mxu0 %v206
  %589 = vmatpush.bf16.msra.mxu0 %v204
  %590 = vmatpush.bf16.msra.mxu0 %v202
  %591 = vmatpush.bf16.msra.mxu0 %v200
  %592 = vmatmul.bf16.gmra.mxu0 %v569
  %v593 = vpop.f32.mrf.mxu0
  %v594 = vadd.f32 %v566, %v593
  %v595 = vpop.f32.mrf.mxu0
  %596 = vdwg.mxu0
  %v597 = vxor.u32 %v581, 2147483648
  %v598 = vxor.u32 %v594, 2147483648
  %v599 = vmul.f32 %v597, 1.442695
  %v600 = vpow.pop %v599
  %v601 = vmul.f32 %v598, 1.442695
  %v602 = vpow.pop %v601
  %v603 = vadd.f32 %v600, 1.0
  %v604 = vadd.f32 %v602, 1.0
  %v605 = vrcp.pop %v603
  %v606 = vmul.f32 %v603, %v605
  %v607 = vsub.f32 1.0, %v606
  %v608 = vmul.f32 %v605, %v607
  %v609 = vadd.f32 %v605, %v608
  %vm610 = vweird.f32 %v603
  %vm611 = vweird.f32 %v605
  %vm612 = vmor %vm610, %vm611
  %v613 = vsel %vm612, %v605, %v609
  %v614 = vand.u32 2147483647, %v603
  %vm615 = vcmp.eq.f32.partialorder %v614, 8.507059e+37
  %v616 = vand.u32 %v603, 2147483648
  %v617 = vor.u32 1.1754944e-38, %v616
  %v618 = vsel %vm615, %v617, %v613
  %v619 = vmul.f32 1.0, %v618
  %v620 = vrcp.pop %v604
  %v621 = vmul.f32 %v604, %v620
  %v622 = vsub.f32 1.0, %v621
  %v623 = vmul.f32 %v620, %v622
  %v624 = vadd.f32 %v620, %v623
  %vm625 = vweird.f32 %v604
  %vm626 = vweird.f32 %v620
  %vm627 = vmor %vm625, %vm626
  %v628 = vsel %vm627, %v620, %v624
  %v629 = vand.u32 2147483647, %v604
  %vm630 = vcmp.eq.f32.partialorder %v629, 8.507059e+37
  %v631 = vand.u32 %v604, 2147483648
  %v632 = vor.u32 1.1754944e-38, %v631
  %v633 = vsel %vm630, %v632, %v628
  %v634 = vmul.f32 1.0, %v633
  %v635 = vtanh.pop %v594
  %v636 = vmul.f32 %v619, %v558
  %638 = vrot.lane.b32.xlu0 %v635, 64
  %v639 = vpop.permute.xlu0 %638
  %v641 = vmul.f32 %v619, %v639
  %643 = vrot.lane.b32.xlu0 %v641, 64
  %v644 = vpop.permute.xlu0 %643
  %v646 = vadd.f32 %v636, %v644
  %v647 = vtanh.pop %v646
  %649 = vrot.lane.b32.xlu0 %v647, 64
  %v650 = vpop.permute.xlu0 %649
  %v652 = vmul.f32 %v634, %v650
  %v653 = vld [vmem:[#allocation2 + $0x50] sm:$0xff]
  %v654 = vld [vmem:[#allocation2 + $0x58] sm:$0xff]
  %v655 = vpack.c.bf16 %v652, %v652
  %v657 = vsel %vm215, %v655, 0
  %659 = vmatpush.bf16.msra.mxu0 0
  %660 = vmatpush.bf16.msra.mxu0 0
  %661 = vmatpush.bf16.msra.mxu0 0
  %662 = vmatpush.bf16.msra.mxu0 0
  %663 = vmatpush.bf16.msra.mxu0 %v205
  %664 = vmatpush.bf16.msra.mxu0 %v203
  %665 = vmatpush.bf16.msra.mxu0 %v201
  %666 = vmatpush.bf16.msra.mxu0 %v199
  %667 = vmatmul.bf16.gmra.mxu0 %v657
  %v668 = vpop.f32.mrf.mxu0
  %v669 = vadd.f32 %v653, %v668
  %v670 = vpop.f32.mrf.mxu0
  %671 = vdwg.mxu0
  %672 = vmatpush.bf16.msra.mxu0 0
  %673 = vmatpush.bf16.msra.mxu0 0
  %674 = vmatpush.bf16.msra.mxu0 0
  %675 = vmatpush.bf16.msra.mxu0 0
  %676 = vmatpush.bf16.msra.mxu0 %v206
  %677 = vmatpush.bf16.msra.mxu0 %v204
  %678 = vmatpush.bf16.msra.mxu0 %v202
  %679 = vmatpush.bf16.msra.mxu0 %v200
  %680 = vmatmul.bf16.gmra.mxu0 %v657
  %v681 = vpop.f32.mrf.mxu0
  %v682 = vadd.f32 %v654, %v681
  %v683 = vpop.f32.mrf.mxu0
  %684 = vdwg.mxu0
  %v685 = vxor.u32 %v669, 2147483648
  %v686 = vxor.u32 %v682, 2147483648
  %v687 = vmul.f32 %v685, 1.442695
  %v688 = vpow.pop %v687
  %v689 = vmul.f32 %v686, 1.442695
  %v690 = vpow.pop %v689
  %v691 = vadd.f32 %v688, 1.0
  %v692 = vadd.f32 %v690, 1.0
  %v693 = vrcp.pop %v691
  %v694 = vmul.f32 %v691, %v693
  %v695 = vsub.f32 1.0, %v694
  %v696 = vmul.f32 %v693, %v695
  %v697 = vadd.f32 %v693, %v696
  %vm698 = vweird.f32 %v691
  %vm699 = vweird.f32 %v693
  %vm700 = vmor %vm698, %vm699
  %v701 = vsel %vm700, %v693, %v697
  %v702 = vand.u32 2147483647, %v691
  %vm703 = vcmp.eq.f32.partialorder %v702, 8.507059e+37
  %v704 = vand.u32 %v691, 2147483648
  %v705 = vor.u32 1.1754944e-38, %v704
  %v706 = vsel %vm703, %v705, %v701
  %v707 = vmul.f32 1.0, %v706
  %v708 = vrcp.pop %v692
  %v709 = vmul.f32 %v692, %v708
  %v710 = vsub.f32 1.0, %v709
  %v711 = vmul.f32 %v708, %v710
  %v712 = vadd.f32 %v708, %v711
  %vm713 = vweird.f32 %v692
  %vm714 = vweird.f32 %v708
  %vm715 = vmor %vm713, %vm714
  %v716 = vsel %vm715, %v708, %v712
  %v717 = vand.u32 2147483647, %v692
  %vm718 = vcmp.eq.f32.partialorder %v717, 8.507059e+37
  %v719 = vand.u32 %v692, 2147483648
  %v720 = vor.u32 1.1754944e-38, %v719
  %v721 = vsel %vm718, %v720, %v716
  %v722 = vmul.f32 1.0, %v721
  %v723 = vtanh.pop %v682
  %v724 = vmul.f32 %v707, %v646
  %726 = vrot.lane.b32.xlu0 %v723, 64
  %v727 = vpop.permute.xlu0 %726
  %v729 = vmul.f32 %v707, %v727
  %731 = vrot.lane.b32.xlu0 %v729, 64
  %v732 = vpop.permute.xlu0 %731
  %v734 = vadd.f32 %v724, %v732
  %v735 = vtanh.pop %v734
  %737 = vrot.lane.b32.xlu0 %v735, 64
  %v738 = vpop.permute.xlu0 %737
  %v740 = vmul.f32 %v722, %v738
  %v741 = vld [vmem:[#allocation2 + $0x60] sm:$0xff]
  %v742 = vld [vmem:[#allocation2 + $0x68] sm:$0xff]
  %v743 = vpack.c.bf16 %v740, %v740
  %v745 = vsel %vm215, %v743, 0
  %747 = vmatpush.bf16.msra.mxu0 0
  %748 = vmatpush.bf16.msra.mxu0 0
  %749 = vmatpush.bf16.msra.mxu0 0
  %750 = vmatpush.bf16.msra.mxu0 0
  %751 = vmatpush.bf16.msra.mxu0 %v205
  %752 = vmatpush.bf16.msra.mxu0 %v203
  %753 = vmatpush.bf16.msra.mxu0 %v201
  %754 = vmatpush.bf16.msra.mxu0 %v199
  %755 = vmatmul.bf16.gmra.mxu0 %v745
  %v756 = vpop.f32.mrf.mxu0
  %v757 = vadd.f32 %v741, %v756
  %v758 = vpop.f32.mrf.mxu0
  %759 = vdwg.mxu0
  %760 = vmatpush.bf16.msra.mxu0 0
  %761 = vmatpush.bf16.msra.mxu0 0
  %762 = vmatpush.bf16.msra.mxu0 0
  %763 = vmatpush.bf16.msra.mxu0 0
  %764 = vmatpush.bf16.msra.mxu0 %v206
  %765 = vmatpush.bf16.msra.mxu0 %v204
  %766 = vmatpush.bf16.msra.mxu0 %v202
  %767 = vmatpush.bf16.msra.mxu0 %v200
  %768 = vmatmul.bf16.gmra.mxu0 %v745
  %v769 = vpop.f32.mrf.mxu0
  %v770 = vadd.f32 %v742, %v769
  %v771 = vpop.f32.mrf.mxu0
  %772 = vdwg.mxu0
  %v773 = vxor.u32 %v757, 2147483648
  %v774 = vxor.u32 %v770, 2147483648
  %v775 = vmul.f32 %v773, 1.442695
  %v776 = vpow.pop %v775
  %v777 = vmul.f32 %v774, 1.442695
  %v778 = vpow.pop %v777
  %v779 = vadd.f32 %v776, 1.0
  %v780 = vadd.f32 %v778, 1.0
  %v781 = vrcp.pop %v779
  %v782 = vmul.f32 %v779, %v781
  %v783 = vsub.f32 1.0, %v782
  %v784 = vmul.f32 %v781, %v783
  %v785 = vadd.f32 %v781, %v784
  %vm786 = vweird.f32 %v779
  %vm787 = vweird.f32 %v781
  %vm788 = vmor %vm786, %vm787
  %v789 = vsel %vm788, %v781, %v785
  %v790 = vand.u32 2147483647, %v779
  %vm791 = vcmp.eq.f32.partialorder %v790, 8.507059e+37
  %v792 = vand.u32 %v779, 2147483648
  %v793 = vor.u32 1.1754944e-38, %v792
  %v794 = vsel %vm791, %v793, %v789
  %v795 = vmul.f32 1.0, %v794
  %v796 = vrcp.pop %v780
  %v797 = vmul.f32 %v780, %v796
  %v798 = vsub.f32 1.0, %v797
  %v799 = vmul.f32 %v796, %v798
  %v800 = vadd.f32 %v796, %v799
  %vm801 = vweird.f32 %v780
  %vm802 = vweird.f32 %v796
  %vm803 = vmor %vm801, %vm802
  %v804 = vsel %vm803, %v796, %v800
  %v805 = vand.u32 2147483647, %v780
  %vm806 = vcmp.eq.f32.partialorder %v805, 8.507059e+37
  %v807 = vand.u32 %v780, 2147483648
  %v808 = vor.u32 1.1754944e-38, %v807
  %v809 = vsel %vm806, %v808, %v804
  %v810 = vmul.f32 1.0, %v809
  %v811 = vtanh.pop %v770
  %v812 = vmul.f32 %v795, %v734
  %814 = vrot.lane.b32.xlu0 %v811, 64
  %v815 = vpop.permute.xlu0 %814
  %v817 = vmul.f32 %v795, %v815
  %819 = vrot.lane.b32.xlu0 %v817, 64
  %v820 = vpop.permute.xlu0 %819
  %v822 = vadd.f32 %v812, %v820
  %v823 = vtanh.pop %v822
  %825 = vrot.lane.b32.xlu0 %v823, 64
  %v826 = vpop.permute.xlu0 %825
  %v828 = vmul.f32 %v810, %v826
  %v829 = vld [vmem:[#allocation2 + $0x70] sm:$0xff]
  %v830 = vld [vmem:[#allocation2 + $0x78] sm:$0xff]
  %v831 = vpack.c.bf16 %v828, %v828
  %v833 = vsel %vm215, %v831, 0
  %835 = vmatpush.bf16.msra.mxu0 0
  %836 = vmatpush.bf16.msra.mxu0 0
  %837 = vmatpush.bf16.msra.mxu0 0
  %838 = vmatpush.bf16.msra.mxu0 0
  %839 = vmatpush.bf16.msra.mxu0 %v205
  %840 = vmatpush.bf16.msra.mxu0 %v203
  %841 = vmatpush.bf16.msra.mxu0 %v201
  %842 = vmatpush.bf16.msra.mxu0 %v199
  %843 = vmatmul.bf16.gmra.mxu0 %v833
  %v844 = vpop.f32.mrf.mxu0
  %v845 = vadd.f32 %v829, %v844
  %v846 = vpop.f32.mrf.mxu0
  %847 = vdwg.mxu0
  %848 = vmatpush.bf16.msra.mxu0 0
  %849 = vmatpush.bf16.msra.mxu0 0
  %850 = vmatpush.bf16.msra.mxu0 0
  %851 = vmatpush.bf16.msra.mxu0 0
  %852 = vmatpush.bf16.msra.mxu0 %v206
  %853 = vmatpush.bf16.msra.mxu0 %v204
  %854 = vmatpush.bf16.msra.mxu0 %v202
  %855 = vmatpush.bf16.msra.mxu0 %v200
  %856 = vmatmul.bf16.gmra.mxu0 %v833
  %v857 = vpop.f32.mrf.mxu0
  %v858 = vadd.f32 %v830, %v857
  %v859 = vpop.f32.mrf.mxu0
  %860 = vdwg.mxu0
  %v861 = vxor.u32 %v845, 2147483648
  %v862 = vxor.u32 %v858, 2147483648
  %v863 = vmul.f32 %v861, 1.442695
  %v864 = vpow.pop %v863
  %v865 = vmul.f32 %v862, 1.442695
  %v866 = vpow.pop %v865
  %v867 = vadd.f32 %v864, 1.0
  %v868 = vadd.f32 %v866, 1.0
  %v869 = vrcp.pop %v867
  %v870 = vmul.f32 %v867, %v869
  %v871 = vsub.f32 1.0, %v870
  %v872 = vmul.f32 %v869, %v871
  %v873 = vadd.f32 %v869, %v872
  %vm874 = vweird.f32 %v867
  %vm875 = vweird.f32 %v869
  %vm876 = vmor %vm874, %vm875
  %v877 = vsel %vm876, %v869, %v873
  %v878 = vand.u32 2147483647, %v867
  %vm879 = vcmp.eq.f32.partialorder %v878, 8.507059e+37
  %v880 = vand.u32 %v867, 2147483648
  %v881 = vor.u32 1.1754944e-38, %v880
  %v882 = vsel %vm879, %v881, %v877
  %v883 = vmul.f32 1.0, %v882
  %v884 = vrcp.pop %v868
  %v885 = vmul.f32 %v868, %v884
  %v886 = vsub.f32 1.0, %v885
  %v887 = vmul.f32 %v884, %v886
  %v888 = vadd.f32 %v884, %v887
  %vm889 = vweird.f32 %v868
  %vm890 = vweird.f32 %v884
  %vm891 = vmor %vm889, %vm890
  %v892 = vsel %vm891, %v884, %v888
  %v893 = vand.u32 2147483647, %v868
  %vm894 = vcmp.eq.f32.partialorder %v893, 8.507059e+37
  %v895 = vand.u32 %v868, 2147483648
  %v896 = vor.u32 1.1754944e-38, %v895
  %v897 = vsel %vm894, %v896, %v892
  %v898 = vmul.f32 1.0, %v897
  %v899 = vtanh.pop %v858
  %v900 = vmul.f32 %v883, %v822
  %902 = vrot.lane.b32.xlu0 %v899, 64
  %v903 = vpop.permute.xlu0 %902
  %v905 = vmul.f32 %v883, %v903
  %907 = vrot.lane.b32.xlu0 %v905, 64
  %v908 = vpop.permute.xlu0 %907
  %v910 = vadd.f32 %v900, %v908
  %v911 = vtanh.pop %v910
  %913 = vrot.lane.b32.xlu0 %v911, 64
  %v914 = vpop.permute.xlu0 %913
  %v916 = vmul.f32 %v898, %v914
  %v917 = vpack.c.bf16 %v916, %v916
  %v918 = vld [vmem:[%s4] sm:$0xf]
  %v919 = vld [vmem:[%s4 + $0x4] sm:$0xf]
  %v920 = vld [vmem:[%s4 + $0x8] sm:$0xf]
  %v921 = vld [vmem:[%s4 + $0xc] sm:$0xf]
  %v922 = vld [vmem:[%s4 + $0x10] sm:$0xf]
  %v923 = vld [vmem:[%s4 + $0x14] sm:$0xf]
  %v924 = vld [vmem:[%s4 + $0x18] sm:$0xf]
  %v925 = vld [vmem:[%s4 + $0x1c] sm:$0xf]
  %v926 = vld [vmem:[%s5] sm:$0x1]
  %v928 = vperm.slane %v926, 0
  %v938 = vunpack.c.l.b16 %v918
  %v939 = vunpack.c.l.b16 %v919
  %v940 = vunpack.c.l.b16 %v920
  %v941 = vunpack.c.l.b16 %v921
  %v942 = vunpack.c.l.b16 %v922
  %v943 = vunpack.c.l.b16 %v923
  %v944 = vunpack.c.l.b16 %v924
  %v945 = vunpack.c.l.b16 %v925
  %v946 = vpack.c.b16 %v939, %v938
  %v947 = vpack.c.b16 %v941, %v940
  %v948 = vpack.c.b16 %v943, %v942
  %v949 = vpack.c.b16 %v945, %v944
  %v955 = vsel %vm215, %v917, 0
  %957 = vmatpush.bf16.msra.mxu0 0
  %958 = vmatpush.bf16.msra.mxu0 0
  %959 = vmatpush.bf16.msra.mxu0 0
  %960 = vmatpush.bf16.msra.mxu0 0
  %961 = vmatpush.bf16.msra.mxu0 %v949
  %962 = vmatpush.bf16.msra.mxu0 %v948
  %963 = vmatpush.bf16.msra.mxu0 %v947
  %964 = vmatpush.bf16.msra.mxu0 %v946
  %965 = vmatmul.bf16.gmra.mxu0 %v955
  %v966 = vpop.f32.mrf.mxu0
  %v967 = vadd.f32 %v928, %v966
  %v968 = vpop.f32.mrf.mxu0
  %969 = vdwg.mxu0
  %v970 = vmul.f32 %v967, 0.5
  %v971 = vmul.f32 %v970, 1.442695
  %v972 = vpow.pop %v971
  %v973 = vld [vmem:[%s6] sm:$0xff]
  %975 = vrot.lane.b32.xlu0 %v973, 16
  %v976 = vpop.permute.xlu0 %975
  %v978 = vmul.f32 %v972, %v976
  %980 = vrot.lane.b32.xlu0 %v978, 112
  %v981 = vpop.permute.xlu0 %980
  %v983 = vadd.f32 %v967, %v981
  %985 = vrot.lane.b32.xlu0 %v983, 32
  %v986 = vpop.permute.xlu0 %985
  %vm988 = vcmask 261120
  %v989 = vsel %vm988, %v967, %v986
  %vm990 = vcmask 392192
  %991 = vst.msk [vmem:[%s7] sm:$0xff] %vm990, %v989
  // Predicated region
  $region30: #{encoder_rnn_forward.1} parent=0 // pred_check
    _
  $region31: #{encoder_rnn_forward.1} parent=0 // pred_check_branch
    %993 = sbr.rel (0) target = $region33
  $region32: #{encoder_rnn_forward.1} parent=0 // pred_region
    _
  $region33: #{encoder_rnn_forward.1} parent=0 // pred_fallthru
    _
  // Predicated region
  $region34: #{encoder_rnn_forward.1} parent=0 // pred_check
    _
  $region35: #{encoder_rnn_forward.1} parent=0 // pred_check_branch
    %995 = sbr.rel (0) target = $region37
  $region36: #{encoder_rnn_forward.1} parent=0 // pred_region
    _
  $region37: #{encoder_rnn_forward.1} parent=0 // pred_fallthru
    _

</llo_original>
